<compile_context>
chip_gen: v5e
topology: v5e:2x2
jax: 0.10.0
libtpu: 0.0.40
codegen_flags: <defaults>
</compile_context>

<pallas_src>
import functools
import math

import jax
import jax.numpy as jnp
from jax.experimental import pallas as pl
from jax.experimental.pallas import tpu as pltpu


def _eca_kernel(w_ref, x_ref, o_ref, *, k_size, channels):
    # w_ref: (k,) f32 in SMEM — conv taps already scaled by 1/N (mean folded in).
    # x_ref: (Bt, N, C) VMEM tile, native dtype.
    # o_ref: (Bt, N, C) VMEM tile, native dtype.
    x = x_ref[...]                                              # (Bt, N, C), native dtype

    # Channel-wise pooled sum over tokens, accumulated in f32 (only the reduction upcasts).
    s = jnp.sum(x.astype(jnp.float32), axis=1)                  # (Bt, C)

    # k-tap "same" cross-correlation across channels with zero padding:
    #   y[b, c] = sum_j w[j] * s[b, c + j - pad]   (0 outside [0, C))
    pad = (k_size - 1) // 2
    idx = jax.lax.broadcasted_iota(jnp.int32, s.shape, 1)       # lane index, (Bt, C)
    y = jnp.zeros_like(s)
    for j in range(k_size):
        d = j - pad                                             # static channel offset
        if d == 0:
            shifted = s
        else:
            # roll so that shifted[b, c] = s[b, (c + d) mod C]  (XLU lane rotation)
            shifted = pltpu.roll(s, (-d) % channels, 1)
        valid = jnp.logical_and(idx + d >= 0, idx + d < channels)
        y = y + w_ref[j] * jnp.where(valid, shifted, 0.0)

    gate = jax.nn.sigmoid(y).astype(o_ref.dtype)                # (Bt, C), native dtype

    # Broadcast multiply over the token axis, entirely in the input dtype.
    o_ref[...] = x * gate[:, None, :]


def _pick_batch_block(B, N, C, itemsize, target_bytes=4 << 20, min_steps=2):
    """Pack several batch rows per grid step when tiles are tiny, but keep >= min_steps
    grid steps (v7x has 2 TensorCores sharded over the 'parallel' grid axis)."""
    per_row = N * C * itemsize
    bt = max(1, min(B, target_bytes // max(per_row, 1)))
    if B >= min_steps:
        bt = max(1, min(bt, B // min_steps))
    while B % bt:                                               # keep blocks exact (no padding)
        bt -= 1
    return bt


def eca_layer_1d_pallas(x, conv_weight, k_size=3):
    """x: (B, N, C); conv_weight: (1, 1, k_size) like torch Conv1d(1, 1, k, bias=False).weight."""
    B, N, C = x.shape
    itemsize = jnp.dtype(x.dtype).itemsize

    # Fold the 1/N of the adaptive average pool into the (linear) conv taps at trace time.
    w_taps = conv_weight.reshape(-1).astype(jnp.float32) / jnp.float32(N)

    bt = _pick_batch_block(B, N, C, itemsize)
    grid = (B // bt,)

    # VMEM budget: in-tile + out-tile, each double-buffered, plus headroom.
    tile_bytes = bt * N * C * itemsize
    needed = 4 * tile_bytes + (2 << 20)
    compiler_kwargs = dict(dimension_semantics=("parallel",))
    if needed > (32 << 20):
        # Raise the scoped limit only when required; cap for v7x's 64 MiB physical VMEM.
        compiler_kwargs["vmem_limit_bytes"] = int(min(needed, 64 << 20))

    kernel = functools.partial(_eca_kernel, k_size=k_size, channels=C)

    return pl.pallas_call(
        kernel,
        out_shape=jax.ShapeDtypeStruct((B, N, C), x.dtype),
        grid_spec=pltpu.PrefetchScalarGridSpec(
            num_scalar_prefetch=1,                      # conv taps -> SMEM
            grid=grid,
            in_specs=[pl.BlockSpec((bt, N, C), lambda b, w: (b, 0, 0))],
            out_specs=pl.BlockSpec((bt, N, C), lambda b, w: (b, 0, 0)),
        ),
        compiler_params=pltpu.CompilerParams(**compiler_kwargs),
    )(w_taps, x)


def _reference(x, conv_weight, k_size=3):
    """Pure-JAX replica of the PyTorch forward for verification."""
    pad = (k_size - 1) // 2
    w = conv_weight.reshape(-1).astype(jnp.float32)             # (k,)
    xf = x.astype(jnp.float32)
    p = jnp.mean(xf, axis=1)                                    # (B, C)
    p_pad = jnp.pad(p, ((0, 0), (pad, pad)))
    C = x.shape[-1]
    y = sum(w[j] * p_pad[:, j:j + C] for j in range(k_size))    # cross-correlation, zero 'same' pad
    gate = jax.nn.sigmoid(y)[:, None, :]                        # (B, 1, C)
    return (xf * gate).astype(x.dtype)


if __name__ == "__main__":
    configs = [
        # (B, N, C, k_size, dtype, atol, rtol)   — C kept a multiple of 128 (lane-dense stores)
        (2, 64, 128, 3, jnp.float32, 1e-5, 1e-5),
        (3, 40, 256, 5, jnp.bfloat16, 2e-2, 2e-2),
    ]

    key = jax.random.PRNGKey(0)
    for (B, N, C, k_size, dtype, atol, rtol) in configs:
        key, kx, kw = jax.random.split(key, 3)
        x = jax.random.normal(kx, (B, N, C), dtype=jnp.float32).astype(dtype)

        # Deterministic Conv1d(1, 1, k, bias=False) weight init (kaiming-uniform style bound).
        bound = 1.0 / math.sqrt(k_size)
        conv_weight = jax.random.uniform(kw, (1, 1, k_size), jnp.float32, -bound, bound)

        out = jax.block_until_ready(eca_layer_1d_pallas(x, conv_weight, k_size=k_size))
        ref = _reference(x, conv_weight, k_size=k_size)

        assert out.shape == x.shape and out.dtype == x.dtype
        assert jnp.allclose(out.astype(jnp.float32), ref.astype(jnp.float32),
                            atol=atol, rtol=rtol), f"mismatch vs reference for {(B, N, C, k_size, dtype)}"

    print("KERNEL_OK")
</pallas_src>

<mosaic_0001>
module attributes {stable_mosaic.version = 11 : i64} {
  func.func @_eca_kernel(%arg0: i32, %arg1: memref<3xf32, #tpu.memory_space<smem>>, %arg2: memref<1x64x128xf32, #tpu.memory_space<vmem>>, %arg3: memref<1x64x128xf32, #tpu.memory_space<vmem>>) attributes {dimension_semantics = [#tpu.dimension_semantics<parallel>], iteration_bounds = array<i64: 2>, scalar_prefetch = 1 : i64, scratch_operands = 0 : i64, tpu.core_type = #tpu.core_type<tc>, window_params = [{transform_indices = @transform_0, window_bounds = array<i64: 1, 64, 128>}, {transform_indices = @transform_1, window_bounds = array<i64: 1, 64, 128>}]} {
    %c0 = arith.constant 0 : index
    %c0_0 = arith.constant 0 : index
    %c0_1 = arith.constant 0 : index
    %0 = vector.load %arg2[%c0, %c0_0, %c0_1] : memref<1x64x128xf32, #tpu.memory_space<vmem>>, vector<1x64x128xf32>
    %cst = arith.constant dense<0.000000e+00> : vector<1x128xf32>
    %1 = vector.multi_reduction <add>, %0, %cst [1] : vector<1x64x128xf32> to vector<1x128xf32>
    %2 = tpu.iota {dimensions = array<i32: 1>} : vector<1x128xi32>
    %cst_2 = arith.constant 0.000000e+00 : f32
    %3 = vector.broadcast %cst_2 : f32 to vector<1x128xf32>
    %c1_i32 = arith.constant 1 : i32
    %4 = tpu.dynamic_rotate %1 by %c1_i32 dim 1 : vector<1x128xf32>, i32 -> vector<1x128xf32>
    %c-1_i32 = arith.constant -1 : i32
    %5 = vector.broadcast %c-1_i32 : i32 to vector<1x128xi32>
    %6 = arith.addi %2, %5 : vector<1x128xi32>
    %c0_i32 = arith.constant 0 : i32
    %7 = vector.broadcast %c0_i32 : i32 to vector<1x128xi32>
    %8 = arith.cmpi sge, %6, %7 : vector<1x128xi32>
    %c-1_i32_3 = arith.constant -1 : i32
    %9 = vector.broadcast %c-1_i32_3 : i32 to vector<1x128xi32>
    %10 = arith.addi %2, %9 : vector<1x128xi32>
    %c128_i32 = arith.constant 128 : i32
    %11 = vector.broadcast %c128_i32 : i32 to vector<1x128xi32>
    %12 = arith.cmpi slt, %10, %11 : vector<1x128xi32>
    %13 = arith.andi %8, %12 : vector<1x128xi1>
    %c0_4 = arith.constant 0 : index
    %14 = memref.load %arg1[%c0_4] : memref<3xf32, #tpu.memory_space<smem>>
    %cst_5 = arith.constant 0.000000e+00 : f32
    %15 = vector.broadcast %cst_5 : f32 to vector<1x128xf32>
    %16 = arith.select %13, %4, %15 : vector<1x128xi1>, vector<1x128xf32>
    %17 = vector.broadcast %14 : f32 to vector<1x128xf32>
    %18 = arith.mulf %17, %16 : vector<1x128xf32>
    %19 = arith.addf %3, %18 : vector<1x128xf32>
    %c0_i32_6 = arith.constant 0 : i32
    %20 = vector.broadcast %c0_i32_6 : i32 to vector<1x128xi32>
    %21 = arith.addi %2, %20 : vector<1x128xi32>
    %c0_i32_7 = arith.constant 0 : i32
    %22 = vector.broadcast %c0_i32_7 : i32 to vector<1x128xi32>
    %23 = arith.cmpi sge, %21, %22 : vector<1x128xi32>
    %c0_i32_8 = arith.constant 0 : i32
    %24 = vector.broadcast %c0_i32_8 : i32 to vector<1x128xi32>
    %25 = arith.addi %2, %24 : vector<1x128xi32>
    %c128_i32_9 = arith.constant 128 : i32
    %26 = vector.broadcast %c128_i32_9 : i32 to vector<1x128xi32>
    %27 = arith.cmpi slt, %25, %26 : vector<1x128xi32>
    %28 = arith.andi %23, %27 : vector<1x128xi1>
    %c1 = arith.constant 1 : index
    %29 = memref.load %arg1[%c1] : memref<3xf32, #tpu.memory_space<smem>>
    %cst_10 = arith.constant 0.000000e+00 : f32
    %30 = vector.broadcast %cst_10 : f32 to vector<1x128xf32>
    %31 = arith.select %28, %1, %30 : vector<1x128xi1>, vector<1x128xf32>
    %32 = vector.broadcast %29 : f32 to vector<1x128xf32>
    %33 = arith.mulf %32, %31 : vector<1x128xf32>
    %34 = arith.addf %19, %33 : vector<1x128xf32>
    %c127_i32 = arith.constant 127 : i32
    %35 = tpu.dynamic_rotate %1 by %c127_i32 dim 1 : vector<1x128xf32>, i32 -> vector<1x128xf32>
    %c1_i32_11 = arith.constant 1 : i32
    %36 = vector.broadcast %c1_i32_11 : i32 to vector<1x128xi32>
    %37 = arith.addi %2, %36 : vector<1x128xi32>
    %c0_i32_12 = arith.constant 0 : i32
    %38 = vector.broadcast %c0_i32_12 : i32 to vector<1x128xi32>
    %39 = arith.cmpi sge, %37, %38 : vector<1x128xi32>
    %c1_i32_13 = arith.constant 1 : i32
    %40 = vector.broadcast %c1_i32_13 : i32 to vector<1x128xi32>
    %41 = arith.addi %2, %40 : vector<1x128xi32>
    %c128_i32_14 = arith.constant 128 : i32
    %42 = vector.broadcast %c128_i32_14 : i32 to vector<1x128xi32>
    %43 = arith.cmpi slt, %41, %42 : vector<1x128xi32>
    %44 = arith.andi %39, %43 : vector<1x128xi1>
    %c2 = arith.constant 2 : index
    %45 = memref.load %arg1[%c2] : memref<3xf32, #tpu.memory_space<smem>>
    %cst_15 = arith.constant 0.000000e+00 : f32
    %46 = vector.broadcast %cst_15 : f32 to vector<1x128xf32>
    %47 = arith.select %44, %35, %46 : vector<1x128xi1>, vector<1x128xf32>
    %48 = vector.broadcast %45 : f32 to vector<1x128xf32>
    %49 = arith.mulf %48, %47 : vector<1x128xf32>
    %50 = arith.addf %34, %49 : vector<1x128xf32>
    %51 = arith.negf %50 : vector<1x128xf32>
    %52 = math.exp %51 : vector<1x128xf32>
    %cst_16 = arith.constant 1.000000e+00 : f32
    %53 = vector.broadcast %cst_16 : f32 to vector<1x128xf32>
    %54 = arith.addf %53, %52 : vector<1x128xf32>
    %55 = arith.divf %53, %54 : vector<1x128xf32>
    %56 = vector.shape_cast %55 : vector<1x128xf32> to vector<1x1x128xf32>
    %57 = vector.broadcast %56 : vector<1x1x128xf32> to vector<1x64x128xf32>
    %58 = arith.mulf %0, %57 : vector<1x64x128xf32>
    %c0_17 = arith.constant 0 : index
    %c0_18 = arith.constant 0 : index
    %c0_19 = arith.constant 0 : index
    %59 = vector.load %arg3[%c0_17, %c0_18, %c0_19] : memref<1x64x128xf32, #tpu.memory_space<vmem>>, vector<1x64x128xf32>
    tpu.vector_store %arg3[%c0_17, %c0_18, %c0_19], %58 {strides = array<i32>} : memref<1x64x128xf32, #tpu.memory_space<vmem>>, vector<1x64x128xf32>,
    return
  }
  func.func @transform_0(%arg0: i32, %arg1: memref<3xf32, #tpu.memory_space<smem>>) -> (i32, i32, i32) {
    %c0_i32 = arith.constant 0 : i32
    %c0_i32_0 = arith.constant 0 : i32
    %c0_i32_1 = arith.constant 0 : i32
    return %arg0, %c0_i32, %c0_i32_0 : i32, i32, i32
  }
  func.func @transform_1(%arg0: i32, %arg1: memref<3xf32, #tpu.memory_space<smem>>) -> (i32, i32, i32) {
    %c0_i32 = arith.constant 0 : i32
    %c0_i32_0 = arith.constant 0 : i32
    %c0_i32_1 = arith.constant 0 : i32
    return %arg0, %c0_i32, %c0_i32_0 : i32, i32, i32
  }
}

</mosaic_0001>

<llo_original>
// kernel: tpu_custom_call.1
$region0: #{tpu_custom_call.1}
  #allocation0 [shape = 'u32[]', space=smem, size = 0x4, offset = 0x4, fixed_abs, tag = 'smem constant byte address 0x4 - core index']
  #allocation1 [shape = 'u32[72,128]{1,0:T(1,128)}', space=vmem, size = 0x9000, scoped, tag = 'internal scratch']
  #allocation2 [shape = 's32[1]{0}', space=sflag, size = 0x4, scoped, tag = 'scoped memory for tpu_custom_call.1']
  #allocation3 [shape = 'u8[512]{0}', space=smem, size = 0x200, scoped, tag = 'prefetched SMEM operand 0']
  %s0 = inlined_call_operand.hbm [shape: f32[3], index: 0, kind: input, shape index: {}]
  %s1 = inlined_call_operand.hbm [shape: f32[2,64,128], index: 1, kind: input, shape index: {}]
  %s2 = inlined_call_operand.hbm [shape: f32[2,64,128], index: 2, kind: output, shape index: {}]
  %s3 = sld [smem:[#allocation0]]
  $region41: #{tpu_custom_call.1} parent=0
    _
  %s5 = ssub.s32 1, %s3
  %s6 = scalar_select 0, %s5, %s3
  %s8 = sshll.u32 %s0, 4
  %s9 = int_to_ptr.hbm [resolvable:$true] %s8
  %11 = dma.hbm_to_smem %s9, 16, [#allocation3], [#allocation2]
  %13 = dma.done [#allocation2], 16
  %14 = sfence
  $region1: #{tpu_custom_call.1} parent=0
    #allocation4 [shape = 'u8[65536]{0}', space=vmem, size = 0x10000, scoped, tag = 'input window, operand 1']
    #allocation5 [shape = 's32[2]{0}', space=sflag, size = 0x8, scoped, tag = 'scoped memory for tpu_custom_call.1']
    #allocation6 [shape = 's32[2]{0}', space=sflag, size = 0x8, scoped, tag = 'scoped memory for tpu_custom_call.1']
    #allocation7 [shape = 'u8[65536]{0}', space=vmem, size = 0x10000, scoped, tag = 'output window, operand 0']
    %15 = vsyncpa [#allocation5], 0
    %s16 = scalar_lea.sflag [#allocation5], 1
    %17 = vsyncpa %s16, 0
    %18 = vsyncpa [#allocation6], 0
    %s19 = scalar_lea.sflag [#allocation6], 1
    %20 = vsyncpa %s19, 0
    loop: start=0, step=1, limit=4
    $region2: #{tpu_custom_call.1} parent=1 // loop_pre_header
      _
    $region3: #{tpu_custom_call.1} parent=1 // loop_header
      %s22 = sphi 0, %s26
      %p23 = scmp.ge.s32.totalorder %s22, 4
      %s32 = sphi 0, %s34
      %s35 = sphi 0, %s32
      %s36 = sphi 0, %s35
      %s52 = sphi 0, %s36
      %s58 = sphi 0, %s60
      %s61 = sphi 0, %s58
      %s62 = sphi 0, %s61
      %s78 = sphi 0, %s62
    $region4: #{tpu_custom_call.1} parent=1 // loop_header_branch
      %25 = sbr.rel (%p23) target = $region8
    $region5: #{tpu_custom_call.1} parent=1 // loop_body
      %s27 = ssub.s32 %s22, 1
      %s28 = ssub.s32 %s22, 2
      %s29 = sadd.s32 %s22, 1
      %s30 = ssub.s32 %s22, %s29
      %p31 = scmp.eq.s32.totalorder %s30, 0
      %s33 = sadd.s32 %s32, 1
      %s34 = scalar_select %p31, %s32, %s33
      %p37 = pneg %p31
      %p38 = scmp.eq.s32.totalorder %s22, 1
      %p39 = por %p37, %p38
      %p40 = scmp.ne.s32.totalorder %s32, %s35
      %p41 = scmp.eq.s32.totalorder %s22, 0
      %p42 = por %p40, %p41
      %p43 = scmp.ne.s32.totalorder %s32, %s35
      %p44 = scmp.eq.s32.totalorder %s27, 1
      %p45 = por %p43, %p44
      %p46 = scmp.ne.s32.totalorder %s35, %s36
      %p47 = scmp.eq.s32.totalorder %s27, 0
      %p48 = por %p46, %p47
      %p49 = scmp.ne.s32.totalorder %s35, %s36
      %p50 = scmp.eq.s32.totalorder %s28, 1
      %p51 = por %p49, %p50
      %p53 = scmp.ne.s32.totalorder %s36, %s52
      %p54 = scmp.eq.s32.totalorder %s28, 0
      %p55 = por %p53, %p54
      %s56 = ssub.s32 %s22, %s29
      %p57 = scmp.eq.s32.totalorder %s56, 0
      %s59 = sadd.s32 %s58, 1
      %s60 = scalar_select %p57, %s58, %s59
      %p63 = pneg %p57
      %p64 = scmp.eq.s32.totalorder %s22, 1
      %p65 = por %p63, %p64
      %p66 = scmp.ne.s32.totalorder %s58, %s61
      %p67 = scmp.eq.s32.totalorder %s22, 0
      %p68 = por %p66, %p67
      %p69 = scmp.ne.s32.totalorder %s58, %s61
      %p70 = scmp.eq.s32.totalorder %s27, 1
      %p71 = por %p69, %p70
      %p72 = scmp.ne.s32.totalorder %s61, %s62
      %p73 = scmp.eq.s32.totalorder %s27, 0
      %p74 = por %p72, %p73
      %p75 = scmp.ne.s32.totalorder %s61, %s62
      %p76 = scmp.eq.s32.totalorder %s28, 1
      %p77 = por %p75, %p76
      %p79 = scmp.ne.s32.totalorder %s62, %s78
      %p80 = scmp.eq.s32.totalorder %s28, 0
      %p81 = por %p79, %p80
      %p82 = scmp.le.s32.totalorder 1, %s22
      %p83 = scmp.lt.s32.totalorder %s22, 3
      %p84 = pnand %p82, %p83
      %p85 = pneg %p84
      // Predicated region
      $region9: #{tpu_custom_call.1} parent=5 // pred_check
        _
      $region10: #{tpu_custom_call.1} parent=5 // pred_check_branch
        %87 = sbr.rel (%p84) target = $region12
      $region11: #{tpu_custom_call.1} parent=5 // pred_region
        %s88 = ssub.s32 %s22, 1
      $region12: #{tpu_custom_call.1} parent=5 // pred_fallthru
        _
      %p89 = scmp.lt.s32.totalorder %s22, 2
      // Predicated region
      $region13: #{tpu_custom_call.1} parent=5 // pred_check
        %p90 = pneg %p89
      $region14: #{tpu_custom_call.1} parent=5 // pred_check_branch
        %92 = sbr.rel (%p90) target = $region16
      $region15: #{tpu_custom_call.1} parent=5 // pred_region
        // Predicated region
        $region17: #{tpu_custom_call.1} parent=15 // pred_check
          %p93 = pneg %p42
        $region18: #{tpu_custom_call.1} parent=15 // pred_check_branch
          %95 = sbr.rel (%p93) target = $region20
        $region19: #{tpu_custom_call.1} parent=15 // pred_region
          %s96 = sand.u32 %s32, 1
          %s97 = scalar_lea.sflag [#allocation5], %s96
          %s98 = sand.u32 %s32, 1
          %s99 = smul.addr %s98, 64
          %s100 = scalar_lea.vmem [#allocation4], %s99
          %102 = vsyncadd %s97, 0
          %s103 = smul.addr %s22, 8
          %s104 = smul.addr %s103, 8
          %s105 = scalar_lea.hbm %s1, %s104
          %s106 = sshll.u32 %s105, 4
          %s107 = int_to_ptr.hbm [resolvable:$true] %s106
          %s108 = sshll.u32 %s100, 4
          %s109 = int_to_ptr.vmem [resolvable:$true] %s108
          %114 = dma.hbm_to_vmem [thread:$0]  %s107, 1024, %s109, %s97, 128, 128, 8
        $region20: #{tpu_custom_call.1} parent=15 // pred_fallthru
          _
      $region16: #{tpu_custom_call.1} parent=5 // pred_fallthru
        _
      %p115 = scmp.le.s32.totalorder 1, %s22
      %p116 = scmp.lt.s32.totalorder %s22, 3
      %p117 = pnand %p115, %p116
      %p118 = pneg %p117
      // Predicated region
      $region21: #{tpu_custom_call.1} parent=5 // pred_check
        _
      $region22: #{tpu_custom_call.1} parent=5 // pred_check_branch
        %120 = sbr.rel (%p117) target = $region24
      $region23: #{tpu_custom_call.1} parent=5 // pred_region
        %s121 = ssub.s32 %s22, 1
        %s122 = sand.u32 %s35, 1
        %s123 = scalar_lea.sflag [#allocation5], %s122
        %s124 = sand.u32 %s35, 1
        %s125 = smul.addr %s124, 64
        %s126 = scalar_lea.vmem [#allocation4], %s125
        // Predicated region
        $region25: #{tpu_custom_call.1} parent=23 // pred_check
          %p127 = pneg %p48
        $region26: #{tpu_custom_call.1} parent=23 // pred_check_branch
          %129 = sbr.rel (%p127) target = $region28
        $region27: #{tpu_custom_call.1} parent=23 // pred_region
          %131 = dma.done %s123, 1024
        $region28: #{tpu_custom_call.1} parent=23 // pred_fallthru
          _
        %s132 = sand.u32 %s35, 1
        %s133 = scalar_lea.sflag [#allocation5], %s132
        %s134 = sand.u32 %s35, 1
        %s135 = smul.addr %s134, 64
        %s136 = scalar_lea.vmem [#allocation4], %s135
        %p137 = pneg %p48
        %p138 = pneg %p45
        %p139 = pneg %p74
        %p140 = pneg %p71
        %s141 = sand.u32 %s61, 1
        %s142 = scalar_lea.sflag [#allocation6], %s141
        %s143 = sand.u32 %s61, 1
        %s144 = smul.addr %s143, 64
        %s145 = scalar_lea.vmem [#allocation7], %s144
        %v146 = vld [vmem:[%s126] sm:$0xff]
        %v147 = vld [vmem:[%s126 + $0x8] sm:$0xff]
        %v148 = vld [vmem:[%s126 + $0x10] sm:$0xff]
        %v149 = vld [vmem:[%s126 + $0x18] sm:$0xff]
        %v150 = vld [vmem:[%s126 + $0x20] sm:$0xff]
        %v151 = vld [vmem:[%s126 + $0x28] sm:$0xff]
        %v152 = vld [vmem:[%s126 + $0x30] sm:$0xff]
        %v153 = vld [vmem:[%s126 + $0x38] sm:$0xff]
        %v154 = vadd.f32 %v146, %v147
        %v155 = vadd.f32 %v154, %v148
        %v156 = vadd.f32 %v155, %v149
        %v157 = vadd.f32 %v156, %v150
        %v158 = vadd.f32 %v157, %v151
        %v159 = vadd.f32 %v158, %v152
        %v160 = vadd.f32 %v159, %v153
        %v161 = vrot.slane %v160, 4
        %v162 = vadd.f32 %v160, %v161
        %v163 = vrot.slane %v162, 2
        %v164 = vadd.f32 %v162, %v163
        %v165 = vrot.slane %v164, 1
        %v166 = vadd.f32 %v164, %v165
        %v167 = vlaneseq
        %v168 = vand.u32 %v167, 127
        %169 = vrot.lane.b32.xlu0 %v166, 1
        %v170 = vpop.permute.xlu0 %169
        %v171 = vadd.s32 %v168, 4294967295
        %vm172 = vcmp.ge.s32.totalorder %v171, 0
        %vm173 = vcmp.lt.s32.totalorder %v171, 128
        %vm174 = vmand %vm172, %vm173
        %s175 = sld [smem:[#allocation3]]
        %v176 = vsel %vm174, %v170, 0.0
        %v177 = vstv %s175
        %v178 = vmul.f32 %v177, %v176
        %v179 = vadd.f32 %v178, 0.0
        %vm180 = vcmp.ge.s32.totalorder %v168, 0
        %vm181 = vcmp.lt.s32.totalorder %v168, 128
        %vm182 = vmand %vm180, %vm181
        %s183 = sld [smem:[#allocation3 + $0x1]]
        %v184 = vsel %vm182, %v166, 0.0
        %v185 = vstv %s183
        %v186 = vmul.f32 %v185, %v184
        %v187 = vadd.f32 %v179, %v186
        %188 = vrot.lane.b32.xlu0 %v166, 127
        %v189 = vpop.permute.xlu0 %188
        %v190 = vadd.s32 %v168, 1
        %vm191 = vcmp.ge.s32.totalorder %v190, 0
        %vm192 = vcmp.lt.s32.totalorder %v190, 128
        %vm193 = vmand %vm191, %vm192
        %s194 = sld [smem:[#allocation3 + $0x2]]
        %v195 = vsel %vm193, %v189, 0.0
        %v196 = vstv %s194
        %v197 = vmul.f32 %v196, %v195
        %v198 = vadd.f32 %v187, %v197
        %v199 = vxor.u32 %v198, 2147483648
        %v200 = vmul.f32 %v199, 1.442695
        %v201 = vpow.pop %v200
        %v202 = vadd.f32 %v201, 1.0
        %v203 = vrcp.pop %v202
        %v204 = vmul.f32 %v202, %v203
        %v205 = vsub.f32 1.0, %v204
        %v206 = vmul.f32 %v203, %v205
        %v207 = vadd.f32 %v203, %v206
        %vm208 = vweird.f32 %v202
        %vm209 = vweird.f32 %v203
        %vm210 = vmor %vm208, %vm209
        %v211 = vsel %vm210, %v203, %v207
        %v212 = vand.u32 2147483647, %v202
        %vm213 = vcmp.eq.f32.partialorder %v212, 8.507059e+37
        %v214 = vand.u32 %v202, 2147483648
        %v215 = vor.u32 1.1754944e-38, %v214
        %v216 = vsel %vm213, %v215, %v211
        %v217 = vmul.f32 1.0, %v216
        %v218 = vperm.slane %v217, 0
        %v219 = vmul.f32 %v146, %v218
        %v220 = vmul.f32 %v147, %v218
        %v221 = vmul.f32 %v148, %v218
        %v222 = vmul.f32 %v149, %v218
        %v223 = vmul.f32 %v150, %v218
        %v224 = vmul.f32 %v151, %v218
        %v225 = vmul.f32 %v152, %v218
        %v226 = vmul.f32 %v153, %v218
        %227 = vst [vmem:[%s145] sm:$0xff] %v219
        %228 = vst [vmem:[%s145 + $0x8] sm:$0xff] %v220
        %229 = vst [vmem:[%s145 + $0x10] sm:$0xff] %v221
        %230 = vst [vmem:[%s145 + $0x18] sm:$0xff] %v222
        %231 = vst [vmem:[%s145 + $0x20] sm:$0xff] %v223
        %232 = vst [vmem:[%s145 + $0x28] sm:$0xff] %v224
        %233 = vst [vmem:[%s145 + $0x30] sm:$0xff] %v225
        %234 = vst [vmem:[%s145 + $0x38] sm:$0xff] %v226
        %s235 = sand.u32 %s61, 1
        %s236 = scalar_lea.sflag [#allocation6], %s235
        %s237 = sand.u32 %s61, 1
        %s238 = smul.addr %s237, 64
        %s239 = scalar_lea.vmem [#allocation7], %s238
        // Predicated region
        $region29: #{tpu_custom_call.1} parent=23 // pred_check
          %p240 = pneg %p71
        $region30: #{tpu_custom_call.1} parent=23 // pred_check_branch
          %242 = sbr.rel (%p240) target = $region32
        $region31: #{tpu_custom_call.1} parent=23 // pred_region
          %244 = vsyncadd %s236, 0
          %s245 = smul.addr %s27, 8
          %s246 = smul.addr %s245, 8
          %s247 = scalar_lea.hbm %s2, %s246
          %s248 = sshll.u32 %s239, 4
          %s249 = int_to_ptr.vmem [resolvable:$true] %s248
          %s250 = sshll.u32 %s247, 4
          %s251 = int_to_ptr.hbm [resolvable:$true] %s250
          %256 = dma.vmem_to_hbm [thread:$0]  %s249, 1024, %s251, %s236, 128, 128, 8
        $region32: #{tpu_custom_call.1} parent=23 // pred_fallthru
          _
      $region24: #{tpu_custom_call.1} parent=5 // pred_fallthru
        _
      %p257 = scmp.le.s32.totalorder 2, %s22
      // Predicated region
      $region33: #{tpu_custom_call.1} parent=5 // pred_check
        %p258 = pneg %p257
      $region34: #{tpu_custom_call.1} parent=5 // pred_check_branch
        %260 = sbr.rel (%p258) target = $region36
      $region35: #{tpu_custom_call.1} parent=5 // pred_region
        %s261 = ssub.s32 %s22, 2
        // Predicated region
        $region37: #{tpu_custom_call.1} parent=35 // pred_check
          %p262 = pneg %p77
        $region38: #{tpu_custom_call.1} parent=35 // pred_check_branch
          %264 = sbr.rel (%p262) target = $region40
        $region39: #{tpu_custom_call.1} parent=35 // pred_region
          %s265 = sand.u32 %s62, 1
          %s266 = scalar_lea.sflag [#allocation6], %s265
          %s267 = sand.u32 %s62, 1
          %s268 = smul.addr %s267, 64
          %s269 = scalar_lea.vmem [#allocation7], %s268
          %271 = dma.done %s266, 1024
        $region40: #{tpu_custom_call.1} parent=35 // pred_fallthru
          _
      $region36: #{tpu_custom_call.1} parent=5 // pred_fallthru
        _
    $region6: #{tpu_custom_call.1} parent=1 // loop_footer
      %s26 = sadd.s32 1, %s22
    $region7: #{tpu_custom_call.1} parent=1 // loop_footer_branch
      %21 = sbr.rel target = $region3
    $region8: #{tpu_custom_call.1} parent=1 // loop_exit
      _
    %272 = vsyncpa [#allocation5], 1
    %s273 = scalar_lea.sflag [#allocation5], 1
    %274 = vsyncpa %s273, 1
    %275 = vsyncpa [#allocation6], 1
    %s276 = scalar_lea.sflag [#allocation6], 1
    %277 = vsyncpa %s276, 1

</llo_original>
